<compile_context>
chip_gen: v7x
topology: tpu7x:2x2x1
jax: 0.10.0
libtpu: 0.0.40
codegen_flags: <defaults>
</compile_context>

<pallas_src>
import numpy as np
import jax
import jax.numpy as jnp
from jax import lax
from jax.experimental import pallas as pl
from jax.experimental.pallas import tpu as pltpu

# ----------------------- synthetic sliCQ configuration -----------------------
SL_LEN = 32                              # slice length
HOP = SL_LEN // 2                        # 50% slice overlap
BUCKETS = [(3, 16), (4, 32), (2, 64)]    # ragged (nb_f_bins, nb_m_bins) per bucket

K_PAD = 128                              # padded contraction depth (>= SL_LEN)
ROW_TILE = 128                           # rows per grid step


def _build_slice_window(L: int) -> np.ndarray:
    t = np.arange(L, dtype=np.float64)
    return (0.5 - 0.5 * np.cos(2.0 * np.pi * t / (L - 1))).astype(np.float32)


def _build_bucket_weights(fc_offset: int, F: int, M: int, L: int) -> np.ndarray:
    """Deterministic NSGT analysis atoms for one frequency bucket.

    atom[f, m, t] = g[t] * exp(-2*pi*i * ((fc+f+1)*t/L + m*t/M))
    Returns real matrix W of shape (L, 2*F*M): columns [0:F*M) real parts,
    [F*M:2*F*M) imaginary parts, so  coefs = x_slice @ W  gives stacked re/im.
    """
    t = np.arange(L, dtype=np.float64)
    g = 0.5 - 0.5 * np.cos(2.0 * np.pi * t / (L - 1))          # analysis window
    f_idx = np.arange(F, dtype=np.float64) + fc_offset + 1.0    # center freqs
    m_idx = np.arange(M, dtype=np.float64)
    phase = 2.0 * np.pi * (f_idx[:, None, None] * t[None, None, :] / L
                           + m_idx[None, :, None] * t[None, None, :] / M)
    atom_re = g[None, None, :] * np.cos(phase)                  # (F, M, L)
    atom_im = -g[None, None, :] * np.sin(phase)                 # (F, M, L)
    W = np.concatenate([atom_re.reshape(F * M, L),
                        atom_im.reshape(F * M, L)], axis=0).T   # (L, 2*F*M)
    return W.astype(np.float32)


def _build_fused_weights(buckets, L, k_pad, slice_window):
    """Window-folded, column-concatenated, zero-padded analysis matrix.

    Returns (W_pad (k_pad, n_pad) float32, per-bucket column offsets, n_cols).
    """
    cols = []
    offsets = []
    fc = 0
    off = 0
    for (F, M) in buckets:
        W = _build_bucket_weights(fc, F, M, L)                  # (L, 2*F*M)
        cols.append(slice_window[:, None] * W)                  # fold window into atoms
        offsets.append(off)
        off += 2 * F * M
        fc += F
    Wcat = np.concatenate(cols, axis=1)                         # (L, 608)
    n_cols = Wcat.shape[1]
    n_pad = ((n_cols + 127) // 128) * 128                       # 608 -> 640 (lane dense)
    W_pad = np.zeros((k_pad, n_pad), dtype=np.float32)
    W_pad[:L, :n_cols] = Wcat
    return W_pad, offsets, n_cols


# ------------------------------- Pallas kernel --------------------------------
def _nsgt_fused_kernel(x_ref, w_ref, o_ref):
    # x_ref : (TR, K_PAD)  bf16  windowed-slice rows (window folded into W)
    # w_ref : (K_PAD, Np)  bf16  fused analysis atoms (all buckets, re|im)
    # o_ref : (TR, Np)     f32   stacked real/imag NSGT coefficients
    o_ref[...] = jnp.dot(x_ref[...], w_ref[...],
                         preferred_element_type=jnp.float32)


def _fused_analysis_matmul(xs_pad: jax.Array, w_pad: jax.Array,
                           row_tile: int) -> jax.Array:
    rp, kp = xs_pad.shape
    _, np_cols = w_pad.shape
    grid = (rp // row_tile,)
    flops = 2 * rp * kp * np_cols
    bytes_accessed = xs_pad.size * 2 + w_pad.size * 2 + rp * np_cols * 4
    return pl.pallas_call(
        _nsgt_fused_kernel,
        out_shape=jax.ShapeDtypeStruct((rp, np_cols), jnp.float32),
        grid_spec=pltpu.PrefetchScalarGridSpec(
            num_scalar_prefetch=0,
            grid=grid,
            in_specs=[
                pl.BlockSpec((row_tile, kp), lambda i: (i, 0)),
                pl.BlockSpec((kp, np_cols), lambda i: (0, 0)),  # resident W
            ],
            out_specs=pl.BlockSpec((row_tile, np_cols), lambda i: (i, 0)),
        ),
        compiler_params=pltpu.CompilerParams(
            dimension_semantics=("parallel",),
            vmem_limit_bytes=32 * 1024 * 1024,
        ),
        cost_estimate=pl.CostEstimate(
            flops=flops, transcendentals=0, bytes_accessed=bytes_accessed),
    )(xs_pad, w_pad)


# ------------------------------ forward wrapper --------------------------------
def _extract_slices(x: jax.Array):
    """(N, C, T) -> ((nb_slices*N*C, SL_LEN) slice-major row matrix, nb_slices)."""
    N, C, T = x.shape
    NC = N * C
    x2 = x.reshape(NC, T)
    nb_slices = (T - SL_LEN) // HOP + 1
    idx = jnp.arange(nb_slices)[:, None] * HOP + jnp.arange(SL_LEN)[None, :]
    xs = x2[:, idx]                                       # (NC, nb_slices, L)
    xs = jnp.transpose(xs, (1, 0, 2)).reshape(nb_slices * NC, SL_LEN)
    return xs, nb_slices


def _split_buckets(y: jax.Array, nb_slices: int, N: int, C: int, col_offsets):
    """Split fused coef matrix into ragged per-bucket sliCQ tensors and apply
    the PyTorch post-processing (moveaxis(0,-2) -> view_as_real -> view)."""
    NC = N * C
    outs = []
    for (F, M), off in zip(BUCKETS, col_offsets):
        FM = F * M
        yb = y[:, off:off + 2 * FM]                       # (R, 2*F*M)
        yr = yb[:, :FM].reshape(nb_slices, NC, F, M)
        yi = yb[:, FM:].reshape(nb_slices, NC, F, M)
        c = jnp.stack([yr, yi], axis=-1)                  # (slices, NC, F, M, 2)
        c = jnp.moveaxis(c, 0, -3)                        # (NC, F, slices, M, 2)
        c = c.reshape((N, C) + c.shape[-4:])              # (N, C, F, slices, M, 2)
        outs.append(c)
    return outs


def nsgt_sl_forward(x: jax.Array, w_fused_bf16: jax.Array, col_offsets,
                    row_tile: int = ROW_TILE):
    """Equivalent of NSGT_SL.forward: returns a ragged list, one array per bucket,
    each of shape (nb_samples, nb_channels, nb_f_bins, nb_slices, nb_m_bins, 2)."""
    N, C, T = x.shape
    xs, nb_slices = _extract_slices(x)
    R = xs.shape[0]
    Rp = ((R + row_tile - 1) // row_tile) * row_tile
    Kp, Np = w_fused_bf16.shape
    xs_pad = jnp.zeros((Rp, Kp), dtype=jnp.bfloat16)
    xs_pad = xs_pad.at[:R, :SL_LEN].set(xs.astype(jnp.bfloat16))
    y = _fused_analysis_matmul(xs_pad, w_fused_bf16, row_tile)   # Pallas hot path
    y = y[:R]
    return _split_buckets(y, nb_slices, N, C, col_offsets)


def nsgt_sl_forward_ref(x: jax.Array, w_fused_bf16: jax.Array, col_offsets):
    """Pure-JAX reference with identical semantics and input precision (bf16
    inputs, f32 accumulation) -- no Pallas."""
    N, C, T = x.shape
    xs, nb_slices = _extract_slices(x)
    xs_q = xs.astype(jnp.bfloat16).astype(jnp.float32)
    w = w_fused_bf16[:SL_LEN, :].astype(jnp.float32)
    y = jnp.dot(xs_q, w, precision=lax.Precision.HIGHEST)
    return _split_buckets(y, nb_slices, N, C, col_offsets)


# ------------------------------------ main --------------------------------------
if __name__ == "__main__":
    key = jax.random.PRNGKey(0)
    nb_samples, nb_channels, nb_timesteps = 2, 2, 1040
    x = jax.random.normal(key, (nb_samples, nb_channels, nb_timesteps),
                          dtype=jnp.float32)

    # deterministic "parameters" of the synthetic sliced NSGT
    slice_window = _build_slice_window(SL_LEN)
    w_fused_f32, col_offsets, n_cols = _build_fused_weights(
        BUCKETS, SL_LEN, K_PAD, slice_window)
    w_fused_bf16 = jnp.asarray(w_fused_f32, dtype=jnp.bfloat16)

    out = nsgt_sl_forward(x, w_fused_bf16, col_offsets)
    for o in out:
        jax.block_until_ready(o)

    ref = nsgt_sl_forward_ref(x, w_fused_bf16, col_offsets)
    nb_slices = (nb_timesteps - SL_LEN) // HOP + 1
    for o, r, (F, M) in zip(out, ref, BUCKETS):
        assert o.shape == (nb_samples, nb_channels, F, nb_slices, M, 2), o.shape
        np.testing.assert_allclose(np.asarray(o), np.asarray(r),
                                   rtol=2e-2, atol=2e-2)

    print("KERNEL_OK")
</pallas_src>

<mosaic_0001>
module attributes {stable_mosaic.version = 11 : i64} {
  func.func @_nsgt_fused_kernel(%arg0: i32, %arg1: memref<128x128xbf16, #tpu.memory_space<vmem>>, %arg2: memref<128x640xbf16, #tpu.memory_space<vmem>>, %arg3: memref<128x640xf32, #tpu.memory_space<vmem>>) attributes {dimension_semantics = [#tpu.dimension_semantics<parallel>], iteration_bounds = array<i64: 2>, scalar_prefetch = 0 : i64, scratch_operands = 0 : i64, tpu.core_type = #tpu.core_type<tc>, window_params = [{transform_indices = @transform_0, window_bounds = array<i64: 128, 128>}, {pipeline_mode = #tpu.pipeline_mode<synchronous>, transform_indices = @transform_1, window_bounds = array<i64: 128, 640>}, {transform_indices = @transform_2, window_bounds = array<i64: 128, 640>}]} {
    %c0 = arith.constant 0 : index
    %c0_0 = arith.constant 0 : index
    %0 = vector.load %arg1[%c0, %c0_0] : memref<128x128xbf16, #tpu.memory_space<vmem>>, vector<128x128xbf16>
    %c0_1 = arith.constant 0 : index
    %c0_2 = arith.constant 0 : index
    %1 = vector.load %arg2[%c0_1, %c0_2] : memref<128x640xbf16, #tpu.memory_space<vmem>>, vector<128x640xbf16>
    %cst = arith.constant dense<0.000000e+00> : vector<128x640xf32>
    %2 = tpu.matmul %0, %1, %cst {dimension_numbers = #tpu.dot_dimension_numbers<[1], [0], [0], [1], [0, 0, 1, 1], [], []>} : vector<128x128xbf16>, vector<128x640xbf16>, vector<128x640xf32> -> vector<128x640xf32>
    %c0_3 = arith.constant 0 : index
    %c0_4 = arith.constant 0 : index
    %3 = vector.load %arg3[%c0_3, %c0_4] : memref<128x640xf32, #tpu.memory_space<vmem>>, vector<128x640xf32>
    tpu.vector_store %arg3[%c0_3, %c0_4], %2 {strides = array<i32>} : memref<128x640xf32, #tpu.memory_space<vmem>>, vector<128x640xf32>,
    return
  }
  func.func @transform_0(%arg0: i32) -> (i32, i32) {
    %c0_i32 = arith.constant 0 : i32
    %c0_i32_0 = arith.constant 0 : i32
    return %arg0, %c0_i32 : i32, i32
  }
  func.func @transform_1(%arg0: i32) -> (i32, i32) {
    %c0_i32 = arith.constant 0 : i32
    %c0_i32_0 = arith.constant 0 : i32
    %c0_i32_1 = arith.constant 0 : i32
    return %c0_i32, %c0_i32_0 : i32, i32
  }
  func.func @transform_2(%arg0: i32) -> (i32, i32) {
    %c0_i32 = arith.constant 0 : i32
    %c0_i32_0 = arith.constant 0 : i32
    return %arg0, %c0_i32 : i32, i32
  }
}

</mosaic_0001>

<llo_original>
// kernel: tpu_custom_call.1
$region0: #{tpu_custom_call.1}
  #allocation0 [shape = 'u32[]', space=smem, size = 0x4, offset = 0x4, fixed_abs, tag = 'smem constant byte address 0x4 - core index']
  #allocation1 [shape = 'u32[144,128]{1,0:T(1,128)}', space=vmem, size = 0x12000, scoped, tag = 'internal scratch']
  %s0 = inlined_call_operand.hbm [shape: bf16[256,128], index: 0, kind: input, shape index: {}]
  %s1 = inlined_call_operand.hbm [shape: bf16[128,640], index: 1, kind: input, shape index: {}]
  %s2 = inlined_call_operand.hbm [shape: f32[256,640], index: 2, kind: output, shape index: {}]
  %s3 = sld [smem:[#allocation0]]
  $region49: #{tpu_custom_call.1} parent=0
    _
  %s5 = ssub.s32 1, %s3
  %s6 = scalar_select 0, %s5, %s3
  $region1: #{tpu_custom_call.1} parent=0
    #allocation2 [shape = 'u8[65536]{0}', space=vmem, size = 0x10000, scoped, tag = 'input window, operand 0']
    #allocation3 [shape = 's32[2]{0}', space=sflag, size = 0x8, scoped, tag = 'scoped memory for tpu_custom_call.1']
    #allocation4 [shape = 's32[2]{0}', space=sflag, size = 0x8, scoped, tag = 'scoped memory for tpu_custom_call.1']
    #allocation5 [shape = 'u8[163840]{0}', space=vmem, size = 0x28000, scoped, tag = 'input window, operand 1, single buffered']
    #allocation6 [shape = 's32[1]{0}', space=sflag, size = 0x4, scoped, tag = 'scoped memory for tpu_custom_call.1']
    #allocation7 [shape = 'u8[655360]{0}', space=vmem, size = 0xa0000, scoped, tag = 'output window, operand 0']
    %7 = vsyncpa [#allocation3], 0
    %s8 = scalar_lea.sflag [#allocation3], 1
    %9 = vsyncpa %s8, 0
    %10 = vsyncpa [#allocation6], 0
    %11 = vsyncpa [#allocation4], 0
    %s12 = scalar_lea.sflag [#allocation4], 1
    %13 = vsyncpa %s12, 0
    loop: start=0, step=1, limit=4
    $region2: #{tpu_custom_call.1} parent=1 // loop_pre_header
      _
    $region3: #{tpu_custom_call.1} parent=1 // loop_header
      %s15 = sphi 0, %s19
      %p16 = scmp.ge.s32.totalorder %s15, 4
      %s25 = sphi 0, %s27
      %s28 = sphi 0, %s25
      %s29 = sphi 0, %s28
      %s45 = sphi 0, %s29
      %s49 = sphi 0, %s49
      %s51 = sphi 0, %s49
      %s52 = sphi 0, %s51
      %s66 = sphi 0, %s52
      %s72 = sphi 0, %s74
      %s75 = sphi 0, %s72
      %s76 = sphi 0, %s75
      %s92 = sphi 0, %s76
    $region4: #{tpu_custom_call.1} parent=1 // loop_header_branch
      %18 = sbr.rel (%p16) target = $region8
    $region5: #{tpu_custom_call.1} parent=1 // loop_body
      %s20 = ssub.s32 %s15, 1
      %s21 = ssub.s32 %s15, 2
      %s22 = sadd.s32 %s15, 1
      %s23 = ssub.s32 %s15, %s22
      %p24 = scmp.eq.s32.totalorder %s23, 0
      %s26 = sadd.s32 %s25, 1
      %s27 = scalar_select %p24, %s25, %s26
      %p30 = pneg %p24
      %p31 = scmp.eq.s32.totalorder %s15, 1
      %p32 = por %p30, %p31
      %p33 = scmp.ne.s32.totalorder %s25, %s28
      %p34 = scmp.eq.s32.totalorder %s15, 0
      %p35 = por %p33, %p34
      %p36 = scmp.ne.s32.totalorder %s25, %s28
      %p37 = scmp.eq.s32.totalorder %s20, 1
      %p38 = por %p36, %p37
      %p39 = scmp.ne.s32.totalorder %s28, %s29
      %p40 = scmp.eq.s32.totalorder %s20, 0
      %p41 = por %p39, %p40
      %p42 = scmp.ne.s32.totalorder %s28, %s29
      %p43 = scmp.eq.s32.totalorder %s21, 1
      %p44 = por %p42, %p43
      %p46 = scmp.ne.s32.totalorder %s29, %s45
      %p47 = scmp.eq.s32.totalorder %s21, 0
      %p48 = por %p46, %p47
      %s50 = sadd.s32 %s49, 1
      %p53 = scmp.eq.s32.totalorder %s15, 1
      %p54 = scmp.ne.s32.totalorder %s49, %s51
      %p55 = scmp.eq.s32.totalorder %s15, 0
      %p56 = por %p54, %p55
      %p57 = scmp.ne.s32.totalorder %s49, %s51
      %p58 = scmp.eq.s32.totalorder %s20, 1
      %p59 = por %p57, %p58
      %p60 = scmp.ne.s32.totalorder %s51, %s52
      %p61 = scmp.eq.s32.totalorder %s20, 0
      %p62 = por %p60, %p61
      %p63 = scmp.ne.s32.totalorder %s51, %s52
      %p64 = scmp.eq.s32.totalorder %s21, 1
      %p65 = por %p63, %p64
      %p67 = scmp.ne.s32.totalorder %s52, %s66
      %p68 = scmp.eq.s32.totalorder %s21, 0
      %p69 = por %p67, %p68
      %s70 = ssub.s32 %s15, %s22
      %p71 = scmp.eq.s32.totalorder %s70, 0
      %s73 = sadd.s32 %s72, 1
      %s74 = scalar_select %p71, %s72, %s73
      %p77 = pneg %p71
      %p78 = scmp.eq.s32.totalorder %s15, 1
      %p79 = por %p77, %p78
      %p80 = scmp.ne.s32.totalorder %s72, %s75
      %p81 = scmp.eq.s32.totalorder %s15, 0
      %p82 = por %p80, %p81
      %p83 = scmp.ne.s32.totalorder %s72, %s75
      %p84 = scmp.eq.s32.totalorder %s20, 1
      %p85 = por %p83, %p84
      %p86 = scmp.ne.s32.totalorder %s75, %s76
      %p87 = scmp.eq.s32.totalorder %s20, 0
      %p88 = por %p86, %p87
      %p89 = scmp.ne.s32.totalorder %s75, %s76
      %p90 = scmp.eq.s32.totalorder %s21, 1
      %p91 = por %p89, %p90
      %p93 = scmp.ne.s32.totalorder %s76, %s92
      %p94 = scmp.eq.s32.totalorder %s21, 0
      %p95 = por %p93, %p94
      %p96 = scmp.le.s32.totalorder 1, %s15
      %p97 = scmp.lt.s32.totalorder %s15, 3
      %p98 = pnand %p96, %p97
      %p99 = pneg %p98
      // Predicated region
      $region9: #{tpu_custom_call.1} parent=5 // pred_check
        _
      $region10: #{tpu_custom_call.1} parent=5 // pred_check_branch
        %101 = sbr.rel (%p98) target = $region12
      $region11: #{tpu_custom_call.1} parent=5 // pred_region
        %s102 = ssub.s32 %s15, 1
        // Predicated region
        $region13: #{tpu_custom_call.1} parent=11 // pred_check
          %p103 = pneg %p62
        $region14: #{tpu_custom_call.1} parent=11 // pred_check_branch
          %105 = sbr.rel (%p103) target = $region16
        $region15: #{tpu_custom_call.1} parent=11 // pred_region
          %s107 = ssub.s32 5120, 5120
          %108 = vsyncadd [#allocation6], %s107
          %s109 = sshll.u32 [#allocation5], 4
          %s110 = int_to_ptr.vmem [resolvable:$true] %s109
          %115 = dma.hbm_to_vmem [thread:$0]  %s1, 5120, %s110, [#allocation6], 320, 320, 20
        $region16: #{tpu_custom_call.1} parent=11 // pred_fallthru
          _
      $region12: #{tpu_custom_call.1} parent=5 // pred_fallthru
        _
      %p116 = scmp.lt.s32.totalorder %s15, 2
      // Predicated region
      $region17: #{tpu_custom_call.1} parent=5 // pred_check
        %p117 = pneg %p116
      $region18: #{tpu_custom_call.1} parent=5 // pred_check_branch
        %119 = sbr.rel (%p117) target = $region20
      $region19: #{tpu_custom_call.1} parent=5 // pred_region
        // Predicated region
        $region21: #{tpu_custom_call.1} parent=19 // pred_check
          %p120 = pneg %p35
        $region22: #{tpu_custom_call.1} parent=19 // pred_check_branch
          %122 = sbr.rel (%p120) target = $region24
        $region23: #{tpu_custom_call.1} parent=19 // pred_region
          %s123 = sand.u32 %s25, 1
          %s124 = scalar_lea.sflag [#allocation3], %s123
          %s125 = sand.u32 %s25, 1
          %s126 = smul.addr %s125, 64
          %s127 = scalar_lea.vmem [#allocation2], %s126
          %s128 = smul.u32 16, %s15
          %s130 = ssub.s32 1024, 1024
          %131 = vsyncadd %s124, %s130
          %s132 = smul.addr %s128, 64
          %s133 = scalar_lea.hbm %s0, %s132
          %s134 = sshll.u32 %s127, 4
          %s135 = int_to_ptr.vmem [resolvable:$true] %s134
          %140 = dma.hbm_to_vmem [thread:$0]  %s133, 1024, %s135, %s124, 64, 64, 4
        $region24: #{tpu_custom_call.1} parent=19 // pred_fallthru
          _
      $region20: #{tpu_custom_call.1} parent=5 // pred_fallthru
        _
      %p141 = scmp.le.s32.totalorder 1, %s15
      %p142 = scmp.lt.s32.totalorder %s15, 3
      %p143 = pnand %p141, %p142
      %p144 = pneg %p143
      // Predicated region
      $region25: #{tpu_custom_call.1} parent=5 // pred_check
        _
      $region26: #{tpu_custom_call.1} parent=5 // pred_check_branch
        %146 = sbr.rel (%p143) target = $region28
      $region27: #{tpu_custom_call.1} parent=5 // pred_region
        %s147 = ssub.s32 %s15, 1
        %s148 = sand.u32 %s28, 1
        %s149 = scalar_lea.sflag [#allocation3], %s148
        %s150 = sand.u32 %s28, 1
        %s151 = smul.addr %s150, 64
        %s152 = scalar_lea.vmem [#allocation2], %s151
        // Predicated region
        $region29: #{tpu_custom_call.1} parent=27 // pred_check
          %p153 = pneg %p41
        $region30: #{tpu_custom_call.1} parent=27 // pred_check_branch
          %155 = sbr.rel (%p153) target = $region32
        $region31: #{tpu_custom_call.1} parent=27 // pred_region
          %156 = dma.done %s149, 1024
        $region32: #{tpu_custom_call.1} parent=27 // pred_fallthru
          _
        // Predicated region
        $region33: #{tpu_custom_call.1} parent=27 // pred_check
          %p157 = pneg %p62
        $region34: #{tpu_custom_call.1} parent=27 // pred_check_branch
          %159 = sbr.rel (%p157) target = $region36
        $region35: #{tpu_custom_call.1} parent=27 // pred_region
          %160 = dma.done [#allocation6], 5120
        $region36: #{tpu_custom_call.1} parent=27 // pred_fallthru
          _
        %s161 = sand.u32 %s28, 1
        %s162 = scalar_lea.sflag [#allocation3], %s161
        %s163 = sand.u32 %s28, 1
        %s164 = smul.addr %s163, 64
        %s165 = scalar_lea.vmem [#allocation2], %s164
        %p166 = pneg %p41
        %p167 = pneg %p38
        %p168 = pneg %p62
        %p169 = pneg %p59
        %p170 = pneg %p88
        %p171 = pneg %p85
        %s172 = sand.u32 %s75, 1
        %s173 = scalar_lea.sflag [#allocation4], %s172
        %s174 = sand.u32 %s75, 1
        %s175 = smul.addr %s174, 640
        %s176 = scalar_lea.vmem [#allocation7], %s175
        %s177 = smul.u32 16, %s20
        %s178 = smul.u32 16, %s20
        %v180 = vld [vmem:[%s152] sm:$0xf]
        %v181 = vld [vmem:[%s152 + $0x4] sm:$0xf]
        %v182 = vld [vmem:[%s152 + $0x8] sm:$0xf]
        %v183 = vld [vmem:[%s152 + $0xc] sm:$0xf]
        %v184 = vld [vmem:[%s152 + $0x10] sm:$0xf]
        %v185 = vld [vmem:[%s152 + $0x14] sm:$0xf]
        %v186 = vld [vmem:[%s152 + $0x18] sm:$0xf]
        %v187 = vld [vmem:[%s152 + $0x1c] sm:$0xf]
        %v188 = vld [vmem:[%s152 + $0x20] sm:$0xf]
        %v189 = vld [vmem:[%s152 + $0x24] sm:$0xf]
        %v190 = vld [vmem:[%s152 + $0x28] sm:$0xf]
        %v191 = vld [vmem:[%s152 + $0x2c] sm:$0xf]
        %v192 = vld [vmem:[%s152 + $0x30] sm:$0xf]
        %v193 = vld [vmem:[%s152 + $0x34] sm:$0xf]
        %v194 = vld [vmem:[%s152 + $0x38] sm:$0xf]
        %v195 = vld [vmem:[%s152 + $0x3c] sm:$0xf]
        %v196 = vld [vmem:[#allocation5] sm:$0xff]
        %v197 = vld [vmem:[#allocation5 + $0x8] sm:$0xff]
        %v198 = vld [vmem:[#allocation5 + $0x10] sm:$0xf]
        %v199 = vld [vmem:[#allocation5 + $0x14] sm:$0xff]
        %v200 = vld [vmem:[#allocation5 + $0x1c] sm:$0xff]
        %v201 = vld [vmem:[#allocation5 + $0x24] sm:$0xf]
        %v202 = vld [vmem:[#allocation5 + $0x28] sm:$0xff]
        %v203 = vld [vmem:[#allocation5 + $0x30] sm:$0xff]
        %v204 = vld [vmem:[#allocation5 + $0x38] sm:$0xf]
        %v205 = vld [vmem:[#allocation5 + $0x3c] sm:$0xff]
        %v206 = vld [vmem:[#allocation5 + $0x44] sm:$0xff]
        %v207 = vld [vmem:[#allocation5 + $0x4c] sm:$0xf]
        %v208 = vld [vmem:[#allocation5 + $0x50] sm:$0xff]
        %v209 = vld [vmem:[#allocation5 + $0x58] sm:$0xff]
        %v210 = vld [vmem:[#allocation5 + $0x60] sm:$0xf]
        %v211 = vld [vmem:[#allocation5 + $0x64] sm:$0xff]
        %v212 = vld [vmem:[#allocation5 + $0x6c] sm:$0xff]
        %v213 = vld [vmem:[#allocation5 + $0x74] sm:$0xf]
        %v214 = vld [vmem:[#allocation5 + $0x78] sm:$0xff]
        %v215 = vld [vmem:[#allocation5 + $0x80] sm:$0xff]
        %v216 = vld [vmem:[#allocation5 + $0x88] sm:$0xf]
        %v217 = vld [vmem:[#allocation5 + $0x8c] sm:$0xff]
        %v218 = vld [vmem:[#allocation5 + $0x94] sm:$0xff]
        %v219 = vld [vmem:[#allocation5 + $0x9c] sm:$0xf]
        %v220 = vld [vmem:[#allocation5 + $0xa0] sm:$0xff]
        %v221 = vld [vmem:[#allocation5 + $0xa8] sm:$0xff]
        %v222 = vld [vmem:[#allocation5 + $0xb0] sm:$0xf]
        %v223 = vld [vmem:[#allocation5 + $0xb4] sm:$0xff]
        %v224 = vld [vmem:[#allocation5 + $0xbc] sm:$0xff]
        %v225 = vld [vmem:[#allocation5 + $0xc4] sm:$0xf]
        %v226 = vld [vmem:[#allocation5 + $0xc8] sm:$0xff]
        %v227 = vld [vmem:[#allocation5 + $0xd0] sm:$0xff]
        %v228 = vld [vmem:[#allocation5 + $0xd8] sm:$0xf]
        %v229 = vld [vmem:[#allocation5 + $0xdc] sm:$0xff]
        %v230 = vld [vmem:[#allocation5 + $0xe4] sm:$0xff]
        %v231 = vld [vmem:[#allocation5 + $0xec] sm:$0xf]
        %v232 = vld [vmem:[#allocation5 + $0xf0] sm:$0xff]
        %v233 = vld [vmem:[#allocation5 + $0xf8] sm:$0xff]
        %v234 = vld [vmem:[#allocation5 + $0x100] sm:$0xf]
        %v235 = vld [vmem:[#allocation5 + $0x104] sm:$0xff]
        %v236 = vld [vmem:[#allocation5 + $0x10c] sm:$0xff]
        %v237 = vld [vmem:[#allocation5 + $0x114] sm:$0xf]
        %v238 = vld [vmem:[#allocation5 + $0x118] sm:$0xff]
        %v239 = vld [vmem:[#allocation5 + $0x120] sm:$0xff]
        %v240 = vld [vmem:[#allocation5 + $0x128] sm:$0xf]
        %v241 = vld [vmem:[#allocation5 + $0x12c] sm:$0xff]
        %v242 = vld [vmem:[#allocation5 + $0x134] sm:$0xff]
        %v243 = vld [vmem:[#allocation5 + $0x13c] sm:$0xf]
        %v260 = vunpack.c.l.b16 %v180
        %v261 = vunpack.c.l.b16 %v181
        %v262 = vunpack.c.l.b16 %v182
        %v263 = vunpack.c.l.b16 %v183
        %v264 = vunpack.c.l.b16 %v184
        %v265 = vunpack.c.l.b16 %v185
        %v266 = vunpack.c.l.b16 %v186
        %v267 = vunpack.c.l.b16 %v187
        %v268 = vunpack.c.l.b16 %v188
        %v269 = vunpack.c.l.b16 %v189
        %v270 = vunpack.c.l.b16 %v190
        %v271 = vunpack.c.l.b16 %v191
        %v272 = vunpack.c.l.b16 %v192
        %v273 = vunpack.c.l.b16 %v193
        %v274 = vunpack.c.l.b16 %v194
        %v275 = vunpack.c.l.b16 %v195
        %v276 = vpack.c.b16 %v261, %v260
        %v277 = vpack.c.b16 %v263, %v262
        %v278 = vpack.c.b16 %v265, %v264
        %v279 = vpack.c.b16 %v267, %v266
        %v280 = vpack.c.b16 %v269, %v268
        %v281 = vpack.c.b16 %v271, %v270
        %v282 = vpack.c.b16 %v273, %v272
        %v283 = vpack.c.b16 %v275, %v274
        %v340 = vunpack.c.l.b16 %v196
        %v341 = vunpack.c.h.b16 %v196
        %v342 = vunpack.c.l.b16 %v197
        %v343 = vunpack.c.h.b16 %v197
        %v344 = vunpack.c.l.b16 %v198
        %v345 = vunpack.c.l.b16 %v199
        %v346 = vunpack.c.h.b16 %v199
        %v347 = vunpack.c.l.b16 %v200
        %v348 = vunpack.c.h.b16 %v200
        %v349 = vunpack.c.l.b16 %v201
        %v350 = vunpack.c.l.b16 %v202
        %v351 = vunpack.c.h.b16 %v202
        %v352 = vunpack.c.l.b16 %v203
        %v353 = vunpack.c.h.b16 %v203
        %v354 = vunpack.c.l.b16 %v204
        %v355 = vunpack.c.l.b16 %v205
        %v356 = vunpack.c.h.b16 %v205
        %v357 = vunpack.c.l.b16 %v206
        %v358 = vunpack.c.h.b16 %v206
        %v359 = vunpack.c.l.b16 %v207
        %v360 = vunpack.c.l.b16 %v208
        %v361 = vunpack.c.h.b16 %v208
        %v362 = vunpack.c.l.b16 %v209
        %v363 = vunpack.c.h.b16 %v209
        %v364 = vunpack.c.l.b16 %v210
        %v365 = vunpack.c.l.b16 %v211
        %v366 = vunpack.c.h.b16 %v211
        %v367 = vunpack.c.l.b16 %v212
        %v368 = vunpack.c.h.b16 %v212
        %v369 = vunpack.c.l.b16 %v213
        %v370 = vunpack.c.l.b16 %v214
        %v371 = vunpack.c.h.b16 %v214
        %v372 = vunpack.c.l.b16 %v215
        %v373 = vunpack.c.h.b16 %v215
        %v374 = vunpack.c.l.b16 %v216
        %v375 = vunpack.c.l.b16 %v217
        %v376 = vunpack.c.h.b16 %v217
        %v377 = vunpack.c.l.b16 %v218
        %v378 = vunpack.c.h.b16 %v218
        %v379 = vunpack.c.l.b16 %v219
        %v380 = vunpack.c.l.b16 %v220
        %v381 = vunpack.c.h.b16 %v220
        %v382 = vunpack.c.l.b16 %v221
        %v383 = vunpack.c.h.b16 %v221
        %v384 = vunpack.c.l.b16 %v222
        %v385 = vunpack.c.l.b16 %v223
        %v386 = vunpack.c.h.b16 %v223
        %v387 = vunpack.c.l.b16 %v224
        %v388 = vunpack.c.h.b16 %v224
        %v389 = vunpack.c.l.b16 %v225
        %v390 = vunpack.c.l.b16 %v226
        %v391 = vunpack.c.h.b16 %v226
        %v392 = vunpack.c.l.b16 %v227
        %v393 = vunpack.c.h.b16 %v227
        %v394 = vunpack.c.l.b16 %v228
        %v395 = vunpack.c.l.b16 %v229
        %v396 = vunpack.c.h.b16 %v229
        %v397 = vunpack.c.l.b16 %v230
        %v398 = vunpack.c.h.b16 %v230
        %v399 = vunpack.c.l.b16 %v231
        %v400 = vunpack.c.l.b16 %v232
        %v401 = vunpack.c.h.b16 %v232
        %v402 = vunpack.c.l.b16 %v233
        %v403 = vunpack.c.h.b16 %v233
        %v404 = vunpack.c.l.b16 %v234
        %v405 = vunpack.c.l.b16 %v235
        %v406 = vunpack.c.h.b16 %v235
        %v407 = vunpack.c.l.b16 %v236
        %v408 = vunpack.c.h.b16 %v236
        %v409 = vunpack.c.l.b16 %v237
        %v410 = vunpack.c.l.b16 %v238
        %v411 = vunpack.c.h.b16 %v238
        %v412 = vunpack.c.l.b16 %v239
        %v413 = vunpack.c.h.b16 %v239
        %v414 = vunpack.c.l.b16 %v240
        %v415 = vunpack.c.l.b16 %v241
        %v416 = vunpack.c.h.b16 %v241
        %v417 = vunpack.c.l.b16 %v242
        %v418 = vunpack.c.h.b16 %v242
        %v419 = vunpack.c.l.b16 %v243
        %v420 = vpack.c.b16 %v345, %v340
        %v421 = vpack.c.b16 %v346, %v341
        %v422 = vpack.c.b16 %v347, %v342
        %v423 = vpack.c.b16 %v348, %v343
        %v424 = vpack.c.b16 %v349, %v344
        %v425 = vpack.c.b16 %v355, %v350
        %v426 = vpack.c.b16 %v356, %v351
        %v427 = vpack.c.b16 %v357, %v352
        %v428 = vpack.c.b16 %v358, %v353
        %v429 = vpack.c.b16 %v359, %v354
        %v430 = vpack.c.b16 %v365, %v360
        %v431 = vpack.c.b16 %v366, %v361
        %v432 = vpack.c.b16 %v367, %v362
        %v433 = vpack.c.b16 %v368, %v363
        %v434 = vpack.c.b16 %v369, %v364
        %v435 = vpack.c.b16 %v375, %v370
        %v436 = vpack.c.b16 %v376, %v371
        %v437 = vpack.c.b16 %v377, %v372
        %v438 = vpack.c.b16 %v378, %v373
        %v439 = vpack.c.b16 %v379, %v374
        %v440 = vpack.c.b16 %v385, %v380
        %v441 = vpack.c.b16 %v386, %v381
        %v442 = vpack.c.b16 %v387, %v382
        %v443 = vpack.c.b16 %v388, %v383
        %v444 = vpack.c.b16 %v389, %v384
        %v445 = vpack.c.b16 %v395, %v390
        %v446 = vpack.c.b16 %v396, %v391
        %v447 = vpack.c.b16 %v397, %v392
        %v448 = vpack.c.b16 %v398, %v393
        %v449 = vpack.c.b16 %v399, %v394
        %v450 = vpack.c.b16 %v405, %v400
        %v451 = vpack.c.b16 %v406, %v401
        %v452 = vpack.c.b16 %v407, %v402
        %v453 = vpack.c.b16 %v408, %v403
        %v454 = vpack.c.b16 %v409, %v404
        %v455 = vpack.c.b16 %v415, %v410
        %v456 = vpack.c.b16 %v416, %v411
        %v457 = vpack.c.b16 %v417, %v412
        %v458 = vpack.c.b16 %v418, %v413
        %v459 = vpack.c.b16 %v419, %v414
        %500 = vmatprep.subr.bf16.mxu0 %v421
        %501 = vmatpush1.bf16.msra.mxu0 %v420
        %502 = vmatprep.subr.bf16.mxu0 %v426
        %503 = vmatpush1.bf16.msra.mxu0 %v425
        %504 = vmatprep.subr.bf16.mxu0 %v431
        %505 = vmatpush1.bf16.msra.mxu0 %v430
        %506 = vmatprep.subr.bf16.mxu0 %v436
        %507 = vmatpush1.bf16.msra.mxu0 %v435
        %508 = vmatprep.subr.bf16.mxu0 %v441
        %509 = vmatpush1.bf16.msra.mxu0 %v440
        %510 = vmatprep.subr.bf16.mxu0 %v446
        %511 = vmatpush1.bf16.msra.mxu0 %v445
        %512 = vmatprep.subr.bf16.mxu0 %v451
        %513 = vmatpush1.bf16.msra.mxu0 %v450
        %514 = vmatprep.subr.bf16.mxu0 %v456
        %515 = vmatpush1.bf16.msra.mxu0 %v455
        %516 = vmatprep.subr.bf16.mxu0 0
        %517 = vmatpush1.bf16.msra.mxu0 0
        %518 = vmatprep.subr.bf16.mxu0 0
        %519 = vmatpush1.bf16.msra.mxu0 0
        %520 = vmatprep.subr.bf16.mxu0 0
        %521 = vmatpush1.bf16.msra.mxu0 0
        %522 = vmatprep.subr.bf16.mxu0 0
        %523 = vmatpush1.bf16.msra.mxu0 0
        %524 = vmatprep.subr.bf16.mxu0 0
        %525 = vmatpush1.bf16.msra.mxu0 0
        %526 = vmatprep.subr.bf16.mxu0 0
        %527 = vmatpush1.bf16.msra.mxu0 0
        %528 = vmatprep.subr.bf16.mxu0 0
        %529 = vmatpush1.bf16.msra.mxu0 0
        %530 = vmatprep.subr.bf16.mxu0 0
        %531 = vmatpush1.bf16.msra.mxu0 0
        %532 = vmatprep.mubr.bf16.mxu0 0
        %533 = vmatmul.mubr.bf16.gmra.mrb[0].mxu0 %v276
        %v534 = vpop.f32.mrb[0].mxu0
        %v535 = vadd.f32 0.0, %v534
        %v536 = vpop.f32.mrb[0].mxu0
        %v537 = vadd.f32 0.0, %v536
        %v538 = vpop.f32.mrb[0].mxu0
        %v539 = vadd.f32 0.0, %v538
        %v540 = vpop.f32.mrb[0].mxu0
        %v541 = vadd.f32 0.0, %v540
        %542 = vmatprep.mubr.bf16.mxu0 0
        %543 = vmatmul.mubr.bf16.gmra.mrb[0].mxu0 %v277
        %v544 = vpop.f32.mrb[0].mxu0
        %v545 = vadd.f32 0.0, %v544
        %v546 = vpop.f32.mrb[0].mxu0
        %v547 = vadd.f32 0.0, %v546
        %v548 = vpop.f32.mrb[0].mxu0
        %v549 = vadd.f32 0.0, %v548
        %v550 = vpop.f32.mrb[0].mxu0
        %v551 = vadd.f32 0.0, %v550
        %552 = vmatprep.mubr.bf16.mxu0 0
        %553 = vmatmul.mubr.bf16.gmra.mrb[0].mxu0 %v278
        %v554 = vpop.f32.mrb[0].mxu0
        %v555 = vadd.f32 0.0, %v554
        %v556 = vpop.f32.mrb[0].mxu0
        %v557 = vadd.f32 0.0, %v556
        %v558 = vpop.f32.mrb[0].mxu0
        %v559 = vadd.f32 0.0, %v558
        %v560 = vpop.f32.mrb[0].mxu0
        %v561 = vadd.f32 0.0, %v560
        %562 = vmatprep.mubr.bf16.mxu0 0
        %563 = vmatmul.mubr.bf16.gmra.mrb[0].mxu0 %v279
        %v564 = vpop.f32.mrb[0].mxu0
        %v565 = vadd.f32 0.0, %v564
        %v566 = vpop.f32.mrb[0].mxu0
        %v567 = vadd.f32 0.0, %v566
        %v568 = vpop.f32.mrb[0].mxu0
        %v569 = vadd.f32 0.0, %v568
        %v570 = vpop.f32.mrb[0].mxu0
        %v571 = vadd.f32 0.0, %v570
        %572 = vmatprep.mubr.bf16.mxu0 0
        %573 = vmatmul.mubr.bf16.gmra.mrb[0].mxu0 %v280
        %v574 = vpop.f32.mrb[0].mxu0
        %v575 = vadd.f32 0.0, %v574
        %v576 = vpop.f32.mrb[0].mxu0
        %v577 = vadd.f32 0.0, %v576
        %v578 = vpop.f32.mrb[0].mxu0
        %v579 = vadd.f32 0.0, %v578
        %v580 = vpop.f32.mrb[0].mxu0
        %v581 = vadd.f32 0.0, %v580
        %582 = vmatprep.mubr.bf16.mxu0 0
        %583 = vmatmul.mubr.bf16.gmra.mrb[0].mxu0 %v281
        %v584 = vpop.f32.mrb[0].mxu0
        %v585 = vadd.f32 0.0, %v584
        %v586 = vpop.f32.mrb[0].mxu0
        %v587 = vadd.f32 0.0, %v586
        %v588 = vpop.f32.mrb[0].mxu0
        %v589 = vadd.f32 0.0, %v588
        %v590 = vpop.f32.mrb[0].mxu0
        %v591 = vadd.f32 0.0, %v590
        %592 = vmatprep.mubr.bf16.mxu0 0
        %593 = vmatmul.mubr.bf16.gmra.mrb[0].mxu0 %v282
        %v594 = vpop.f32.mrb[0].mxu0
        %v595 = vadd.f32 0.0, %v594
        %v596 = vpop.f32.mrb[0].mxu0
        %v597 = vadd.f32 0.0, %v596
        %v598 = vpop.f32.mrb[0].mxu0
        %v599 = vadd.f32 0.0, %v598
        %v600 = vpop.f32.mrb[0].mxu0
        %v601 = vadd.f32 0.0, %v600
        %602 = vmatprep.mubr.bf16.mxu0 0
        %603 = vmatmul.mubr.bf16.gmra.mrb[0].mxu0 %v283
        %v604 = vpop.f32.mrb[0].mxu0
        %v605 = vadd.f32 0.0, %v604
        %v606 = vpop.f32.mrb[0].mxu0
        %v607 = vadd.f32 0.0, %v606
        %v608 = vpop.f32.mrb[0].mxu0
        %v609 = vadd.f32 0.0, %v608
        %v610 = vpop.f32.mrb[0].mxu0
        %v611 = vadd.f32 0.0, %v610
        %612 = vdwg.mxu0
        %613 = vmatprep.subr.bf16.mxu0 %v423
        %614 = vmatpush1.bf16.msra.mxu0 %v422
        %615 = vmatprep.subr.bf16.mxu0 %v428
        %616 = vmatpush1.bf16.msra.mxu0 %v427
        %617 = vmatprep.subr.bf16.mxu0 %v433
        %618 = vmatpush1.bf16.msra.mxu0 %v432
        %619 = vmatprep.subr.bf16.mxu0 %v438
        %620 = vmatpush1.bf16.msra.mxu0 %v437
        %621 = vmatprep.subr.bf16.mxu0 %v443
        %622 = vmatpush1.bf16.msra.mxu0 %v442
        %623 = vmatprep.subr.bf16.mxu0 %v448
        %624 = vmatpush1.bf16.msra.mxu0 %v447
        %625 = vmatprep.subr.bf16.mxu0 %v453
        %626 = vmatpush1.bf16.msra.mxu0 %v452
        %627 = vmatprep.subr.bf16.mxu0 %v458
        %628 = vmatpush1.bf16.msra.mxu0 %v457
        %629 = vmatprep.subr.bf16.mxu0 0
        %630 = vmatpush1.bf16.msra.mxu0 0
        %631 = vmatprep.subr.bf16.mxu0 0
        %632 = vmatpush1.bf16.msra.mxu0 0
        %633 = vmatprep.subr.bf16.mxu0 0
        %634 = vmatpush1.bf16.msra.mxu0 0
        %635 = vmatprep.subr.bf16.mxu0 0
        %636 = vmatpush1.bf16.msra.mxu0 0
        %637 = vmatprep.subr.bf16.mxu0 0
        %638 = vmatpush1.bf16.msra.mxu0 0
        %639 = vmatprep.subr.bf16.mxu0 0
        %640 = vmatpush1.bf16.msra.mxu0 0
        %641 = vmatprep.subr.bf16.mxu0 0
        %642 = vmatpush1.bf16.msra.mxu0 0
        %643 = vmatprep.subr.bf16.mxu0 0
        %644 = vmatpush1.bf16.msra.mxu0 0
        %645 = vmatprep.mubr.bf16.mxu0 0
        %646 = vmatmul.mubr.bf16.gmra.mrb[0].mxu0 %v276
        %v647 = vpop.f32.mrb[0].mxu0
        %v648 = vadd.f32 0.0, %v647
        %v649 = vpop.f32.mrb[0].mxu0
        %v650 = vadd.f32 0.0, %v649
        %v651 = vpop.f32.mrb[0].mxu0
        %v652 = vadd.f32 0.0, %v651
        %v653 = vpop.f32.mrb[0].mxu0
        %v654 = vadd.f32 0.0, %v653
        %655 = vmatprep.mubr.bf16.mxu0 0
        %656 = vmatmul.mubr.bf16.gmra.mrb[0].mxu0 %v277
        %v657 = vpop.f32.mrb[0].mxu0
        %v658 = vadd.f32 0.0, %v657
        %v659 = vpop.f32.mrb[0].mxu0
        %v660 = vadd.f32 0.0, %v659
        %v661 = vpop.f32.mrb[0].mxu0
        %v662 = vadd.f32 0.0, %v661
        %v663 = vpop.f32.mrb[0].mxu0
        %v664 = vadd.f32 0.0, %v663
        %665 = vmatprep.mubr.bf16.mxu0 0
        %666 = vmatmul.mubr.bf16.gmra.mrb[0].mxu0 %v278
        %v667 = vpop.f32.mrb[0].mxu0
        %v668 = vadd.f32 0.0, %v667
        %v669 = vpop.f32.mrb[0].mxu0
        %v670 = vadd.f32 0.0, %v669
        %v671 = vpop.f32.mrb[0].mxu0
        %v672 = vadd.f32 0.0, %v671
        %v673 = vpop.f32.mrb[0].mxu0
        %v674 = vadd.f32 0.0, %v673
        %675 = vmatprep.mubr.bf16.mxu0 0
        %676 = vmatmul.mubr.bf16.gmra.mrb[0].mxu0 %v279
        %v677 = vpop.f32.mrb[0].mxu0
        %v678 = vadd.f32 0.0, %v677
        %v679 = vpop.f32.mrb[0].mxu0
        %v680 = vadd.f32 0.0, %v679
        %v681 = vpop.f32.mrb[0].mxu0
        %v682 = vadd.f32 0.0, %v681
        %v683 = vpop.f32.mrb[0].mxu0
        %v684 = vadd.f32 0.0, %v683
        %685 = vmatprep.mubr.bf16.mxu0 0
        %686 = vmatmul.mubr.bf16.gmra.mrb[0].mxu0 %v280
        %v687 = vpop.f32.mrb[0].mxu0
        %v688 = vadd.f32 0.0, %v687
        %v689 = vpop.f32.mrb[0].mxu0
        %v690 = vadd.f32 0.0, %v689
        %v691 = vpop.f32.mrb[0].mxu0
        %v692 = vadd.f32 0.0, %v691
        %v693 = vpop.f32.mrb[0].mxu0
        %v694 = vadd.f32 0.0, %v693
        %695 = vmatprep.mubr.bf16.mxu0 0
        %696 = vmatmul.mubr.bf16.gmra.mrb[0].mxu0 %v281
        %v697 = vpop.f32.mrb[0].mxu0
        %v698 = vadd.f32 0.0, %v697
        %v699 = vpop.f32.mrb[0].mxu0
        %v700 = vadd.f32 0.0, %v699
        %v701 = vpop.f32.mrb[0].mxu0
        %v702 = vadd.f32 0.0, %v701
        %v703 = vpop.f32.mrb[0].mxu0
        %v704 = vadd.f32 0.0, %v703
        %705 = vmatprep.mubr.bf16.mxu0 0
        %706 = vmatmul.mubr.bf16.gmra.mrb[0].mxu0 %v282
        %v707 = vpop.f32.mrb[0].mxu0
        %v708 = vadd.f32 0.0, %v707
        %v709 = vpop.f32.mrb[0].mxu0
        %v710 = vadd.f32 0.0, %v709
        %v711 = vpop.f32.mrb[0].mxu0
        %v712 = vadd.f32 0.0, %v711
        %v713 = vpop.f32.mrb[0].mxu0
        %v714 = vadd.f32 0.0, %v713
        %715 = vmatprep.mubr.bf16.mxu0 0
        %716 = vmatmul.mubr.bf16.gmra.mrb[0].mxu0 %v283
        %v717 = vpop.f32.mrb[0].mxu0
        %v718 = vadd.f32 0.0, %v717
        %v719 = vpop.f32.mrb[0].mxu0
        %v720 = vadd.f32 0.0, %v719
        %v721 = vpop.f32.mrb[0].mxu0
        %v722 = vadd.f32 0.0, %v721
        %v723 = vpop.f32.mrb[0].mxu0
        %v724 = vadd.f32 0.0, %v723
        %725 = vdwg.mxu0
        %726 = vmatprep.subr.bf16.mxu0 0
        %727 = vmatpush1.bf16.msra.mxu0 %v424
        %728 = vmatprep.subr.bf16.mxu0 0
        %729 = vmatpush1.bf16.msra.mxu0 %v429
        %730 = vmatprep.subr.bf16.mxu0 0
        %731 = vmatpush1.bf16.msra.mxu0 %v434
        %732 = vmatprep.subr.bf16.mxu0 0
        %733 = vmatpush1.bf16.msra.mxu0 %v439
        %734 = vmatprep.subr.bf16.mxu0 0
        %735 = vmatpush1.bf16.msra.mxu0 %v444
        %736 = vmatprep.subr.bf16.mxu0 0
        %737 = vmatpush1.bf16.msra.mxu0 %v449
        %738 = vmatprep.subr.bf16.mxu0 0
        %739 = vmatpush1.bf16.msra.mxu0 %v454
        %740 = vmatprep.subr.bf16.mxu0 0
        %741 = vmatpush1.bf16.msra.mxu0 %v459
        %742 = vmatprep.subr.bf16.mxu0 0
        %743 = vmatpush1.bf16.msra.mxu0 0
        %744 = vmatprep.subr.bf16.mxu0 0
        %745 = vmatpush1.bf16.msra.mxu0 0
        %746 = vmatprep.subr.bf16.mxu0 0
        %747 = vmatpush1.bf16.msra.mxu0 0
        %748 = vmatprep.subr.bf16.mxu0 0
        %749 = vmatpush1.bf16.msra.mxu0 0
        %750 = vmatprep.subr.bf16.mxu0 0
        %751 = vmatpush1.bf16.msra.mxu0 0
        %752 = vmatprep.subr.bf16.mxu0 0
        %753 = vmatpush1.bf16.msra.mxu0 0
        %754 = vmatprep.subr.bf16.mxu0 0
        %755 = vmatpush1.bf16.msra.mxu0 0
        %756 = vmatprep.subr.bf16.mxu0 0
        %757 = vmatpush1.bf16.msra.mxu0 0
        %758 = vmatprep.mubr.bf16.mxu0 0
        %759 = vmatmul.mubr.bf16.gmra.mrb[0].mxu0 %v276
        %v760 = vpop.f32.mrb[0].mxu0
        %v761 = vadd.f32 0.0, %v760
        %v762 = vpop.f32.mrb[0].mxu0
        %v763 = vpop.f32.mrb[0].mxu0
        %v764 = vadd.f32 0.0, %v763
        %v765 = vpop.f32.mrb[0].mxu0
        %766 = vmatprep.mubr.bf16.mxu0 0
        %767 = vmatmul.mubr.bf16.gmra.mrb[0].mxu0 %v277
        %v768 = vpop.f32.mrb[0].mxu0
        %v769 = vadd.f32 0.0, %v768
        %v770 = vpop.f32.mrb[0].mxu0
        %v771 = vpop.f32.mrb[0].mxu0
        %v772 = vadd.f32 0.0, %v771
        %v773 = vpop.f32.mrb[0].mxu0
        %774 = vmatprep.mubr.bf16.mxu0 0
        %775 = vmatmul.mubr.bf16.gmra.mrb[0].mxu0 %v278
        %v776 = vpop.f32.mrb[0].mxu0
        %v777 = vadd.f32 0.0, %v776
        %v778 = vpop.f32.mrb[0].mxu0
        %v779 = vpop.f32.mrb[0].mxu0
        %v780 = vadd.f32 0.0, %v779
        %v781 = vpop.f32.mrb[0].mxu0
        %782 = vmatprep.mubr.bf16.mxu0 0
        %783 = vmatmul.mubr.bf16.gmra.mrb[0].mxu0 %v279
        %v784 = vpop.f32.mrb[0].mxu0
        %v785 = vadd.f32 0.0, %v784
        %v786 = vpop.f32.mrb[0].mxu0
        %v787 = vpop.f32.mrb[0].mxu0
        %v788 = vadd.f32 0.0, %v787
        %v789 = vpop.f32.mrb[0].mxu0
        %790 = vmatprep.mubr.bf16.mxu0 0
        %791 = vmatmul.mubr.bf16.gmra.mrb[0].mxu0 %v280
        %v792 = vpop.f32.mrb[0].mxu0
        %v793 = vadd.f32 0.0, %v792
        %v794 = vpop.f32.mrb[0].mxu0
        %v795 = vpop.f32.mrb[0].mxu0
        %v796 = vadd.f32 0.0, %v795
        %v797 = vpop.f32.mrb[0].mxu0
        %798 = vmatprep.mubr.bf16.mxu0 0
        %799 = vmatmul.mubr.bf16.gmra.mrb[0].mxu0 %v281
        %v800 = vpop.f32.mrb[0].mxu0
        %v801 = vadd.f32 0.0, %v800
        %v802 = vpop.f32.mrb[0].mxu0
        %v803 = vpop.f32.mrb[0].mxu0
        %v804 = vadd.f32 0.0, %v803
        %v805 = vpop.f32.mrb[0].mxu0
        %806 = vmatprep.mubr.bf16.mxu0 0
        %807 = vmatmul.mubr.bf16.gmra.mrb[0].mxu0 %v282
        %v808 = vpop.f32.mrb[0].mxu0
        %v809 = vadd.f32 0.0, %v808
        %v810 = vpop.f32.mrb[0].mxu0
        %v811 = vpop.f32.mrb[0].mxu0
        %v812 = vadd.f32 0.0, %v811
        %v813 = vpop.f32.mrb[0].mxu0
        %814 = vmatprep.mubr.bf16.mxu0 0
        %815 = vmatmul.mubr.bf16.gmra.mrb[0].mxu0 %v283
        %v816 = vpop.f32.mrb[0].mxu0
        %v817 = vadd.f32 0.0, %v816
        %v818 = vpop.f32.mrb[0].mxu0
        %v819 = vpop.f32.mrb[0].mxu0
        %v820 = vadd.f32 0.0, %v819
        %v821 = vpop.f32.mrb[0].mxu0
        %822 = vdwg.mxu0
        %823 = vst [vmem:[%s176] sm:$0xff] %v535
        %824 = vst [vmem:[%s176 + $0x8] sm:$0xff] %v537
        %825 = vst [vmem:[%s176 + $0x10] sm:$0xff] %v648
        %826 = vst [vmem:[%s176 + $0x18] sm:$0xff] %v650
        %827 = vst [vmem:[%s176 + $0x20] sm:$0xff] %v761
        %828 = vst [vmem:[%s176 + $0x28] sm:$0xff] %v539
        %829 = vst [vmem:[%s176 + $0x30] sm:$0xff] %v541
        %830 = vst [vmem:[%s176 + $0x38] sm:$0xff] %v652
        %831 = vst [vmem:[%s176 + $0x40] sm:$0xff] %v654
        %832 = vst [vmem:[%s176 + $0x48] sm:$0xff] %v764
        %833 = vst [vmem:[%s176 + $0x50] sm:$0xff] %v545
        %834 = vst [vmem:[%s176 + $0x58] sm:$0xff] %v547
        %835 = vst [vmem:[%s176 + $0x60] sm:$0xff] %v658
        %836 = vst [vmem:[%s176 + $0x68] sm:$0xff] %v660
        %837 = vst [vmem:[%s176 + $0x70] sm:$0xff] %v769
        %838 = vst [vmem:[%s176 + $0x78] sm:$0xff] %v549
        %839 = vst [vmem:[%s176 + $0x80] sm:$0xff] %v551
        %840 = vst [vmem:[%s176 + $0x88] sm:$0xff] %v662
        %841 = vst [vmem:[%s176 + $0x90] sm:$0xff] %v664
        %842 = vst [vmem:[%s176 + $0x98] sm:$0xff] %v772
        %843 = vst [vmem:[%s176 + $0xa0] sm:$0xff] %v555
        %844 = vst [vmem:[%s176 + $0xa8] sm:$0xff] %v557
        %845 = vst [vmem:[%s176 + $0xb0] sm:$0xff] %v668
        %846 = vst [vmem:[%s176 + $0xb8] sm:$0xff] %v670
        %847 = vst [vmem:[%s176 + $0xc0] sm:$0xff] %v777
        %848 = vst [vmem:[%s176 + $0xc8] sm:$0xff] %v559
        %849 = vst [vmem:[%s176 + $0xd0] sm:$0xff] %v561
        %850 = vst [vmem:[%s176 + $0xd8] sm:$0xff] %v672
        %851 = vst [vmem:[%s176 + $0xe0] sm:$0xff] %v674
        %852 = vst [vmem:[%s176 + $0xe8] sm:$0xff] %v780
        %853 = vst [vmem:[%s176 + $0xf0] sm:$0xff] %v565
        %854 = vst [vmem:[%s176 + $0xf8] sm:$0xff] %v567
        %855 = vst [vmem:[%s176 + $0x100] sm:$0xff] %v678
        %856 = vst [vmem:[%s176 + $0x108] sm:$0xff] %v680
        %857 = vst [vmem:[%s176 + $0x110] sm:$0xff] %v785
        %858 = vst [vmem:[%s176 + $0x118] sm:$0xff] %v569
        %859 = vst [vmem:[%s176 + $0x120] sm:$0xff] %v571
        %860 = vst [vmem:[%s176 + $0x128] sm:$0xff] %v682
        %861 = vst [vmem:[%s176 + $0x130] sm:$0xff] %v684
        %862 = vst [vmem:[%s176 + $0x138] sm:$0xff] %v788
        %863 = vst [vmem:[%s176 + $0x140] sm:$0xff] %v575
        %864 = vst [vmem:[%s176 + $0x148] sm:$0xff] %v577
        %865 = vst [vmem:[%s176 + $0x150] sm:$0xff] %v688
        %866 = vst [vmem:[%s176 + $0x158] sm:$0xff] %v690
        %867 = vst [vmem:[%s176 + $0x160] sm:$0xff] %v793
        %868 = vst [vmem:[%s176 + $0x168] sm:$0xff] %v579
        %869 = vst [vmem:[%s176 + $0x170] sm:$0xff] %v581
        %870 = vst [vmem:[%s176 + $0x178] sm:$0xff] %v692
        %871 = vst [vmem:[%s176 + $0x180] sm:$0xff] %v694
        %872 = vst [vmem:[%s176 + $0x188] sm:$0xff] %v796
        %873 = vst [vmem:[%s176 + $0x190] sm:$0xff] %v585
        %874 = vst [vmem:[%s176 + $0x198] sm:$0xff] %v587
        %875 = vst [vmem:[%s176 + $0x1a0] sm:$0xff] %v698
        %876 = vst [vmem:[%s176 + $0x1a8] sm:$0xff] %v700
        %877 = vst [vmem:[%s176 + $0x1b0] sm:$0xff] %v801
        %878 = vst [vmem:[%s176 + $0x1b8] sm:$0xff] %v589
        %879 = vst [vmem:[%s176 + $0x1c0] sm:$0xff] %v591
        %880 = vst [vmem:[%s176 + $0x1c8] sm:$0xff] %v702
        %881 = vst [vmem:[%s176 + $0x1d0] sm:$0xff] %v704
        %882 = vst [vmem:[%s176 + $0x1d8] sm:$0xff] %v804
        %883 = vst [vmem:[%s176 + $0x1e0] sm:$0xff] %v595
        %884 = vst [vmem:[%s176 + $0x1e8] sm:$0xff] %v597
        %885 = vst [vmem:[%s176 + $0x1f0] sm:$0xff] %v708
        %886 = vst [vmem:[%s176 + $0x1f8] sm:$0xff] %v710
        %887 = vst [vmem:[%s176 + $0x200] sm:$0xff] %v809
        %888 = vst [vmem:[%s176 + $0x208] sm:$0xff] %v599
        %889 = vst [vmem:[%s176 + $0x210] sm:$0xff] %v601
        %890 = vst [vmem:[%s176 + $0x218] sm:$0xff] %v712
        %891 = vst [vmem:[%s176 + $0x220] sm:$0xff] %v714
        %892 = vst [vmem:[%s176 + $0x228] sm:$0xff] %v812
        %893 = vst [vmem:[%s176 + $0x230] sm:$0xff] %v605
        %894 = vst [vmem:[%s176 + $0x238] sm:$0xff] %v607
        %895 = vst [vmem:[%s176 + $0x240] sm:$0xff] %v718
        %896 = vst [vmem:[%s176 + $0x248] sm:$0xff] %v720
        %897 = vst [vmem:[%s176 + $0x250] sm:$0xff] %v817
        %898 = vst [vmem:[%s176 + $0x258] sm:$0xff] %v609
        %899 = vst [vmem:[%s176 + $0x260] sm:$0xff] %v611
        %900 = vst [vmem:[%s176 + $0x268] sm:$0xff] %v722
        %901 = vst [vmem:[%s176 + $0x270] sm:$0xff] %v724
        %902 = vst [vmem:[%s176 + $0x278] sm:$0xff] %v820
        %s903 = sand.u32 %s75, 1
        %s904 = scalar_lea.sflag [#allocation4], %s903
        %s905 = sand.u32 %s75, 1
        %s906 = smul.addr %s905, 640
        %s907 = scalar_lea.vmem [#allocation7], %s906
        // Predicated region
        $region37: #{tpu_custom_call.1} parent=27 // pred_check
          %p908 = pneg %p85
        $region38: #{tpu_custom_call.1} parent=27 // pred_check_branch
          %910 = sbr.rel (%p908) target = $region40
        $region39: #{tpu_custom_call.1} parent=27 // pred_region
          %s911 = smul.u32 16, %s20
          %s913 = ssub.s32 10240, 10240
          %914 = vsyncadd %s904, %s913
          %s915 = smul.addr %s911, 5
          %s916 = smul.addr %s915, 128
          %s917 = scalar_lea.hbm %s2, %s916
          %s918 = sshll.u32 %s907, 4
          %s919 = int_to_ptr.vmem [resolvable:$true] %s918
          %924 = dma.vmem_to_hbm [thread:$0]  %s919, 10240, %s917, %s904, 640, 640, 40
        $region40: #{tpu_custom_call.1} parent=27 // pred_fallthru
          _
      $region28: #{tpu_custom_call.1} parent=5 // pred_fallthru
        _
      %p925 = scmp.le.s32.totalorder 2, %s15
      // Predicated region
      $region41: #{tpu_custom_call.1} parent=5 // pred_check
        %p926 = pneg %p925
      $region42: #{tpu_custom_call.1} parent=5 // pred_check_branch
        %928 = sbr.rel (%p926) target = $region44
      $region43: #{tpu_custom_call.1} parent=5 // pred_region
        %s929 = ssub.s32 %s15, 2
        // Predicated region
        $region45: #{tpu_custom_call.1} parent=43 // pred_check
          %p930 = pneg %p91
        $region46: #{tpu_custom_call.1} parent=43 // pred_check_branch
          %932 = sbr.rel (%p930) target = $region48
        $region47: #{tpu_custom_call.1} parent=43 // pred_region
          %s933 = sand.u32 %s76, 1
          %s934 = scalar_lea.sflag [#allocation4], %s933
          %s935 = sand.u32 %s76, 1
          %s936 = smul.addr %s935, 640
          %s937 = scalar_lea.vmem [#allocation7], %s936
          %938 = dma.done %s934, 10240
        $region48: #{tpu_custom_call.1} parent=43 // pred_fallthru
          _
      $region44: #{tpu_custom_call.1} parent=5 // pred_fallthru
        _
    $region6: #{tpu_custom_call.1} parent=1 // loop_footer
      %s19 = sadd.s32 1, %s15
    $region7: #{tpu_custom_call.1} parent=1 // loop_footer_branch
      %14 = sbr.rel target = $region3
    $region8: #{tpu_custom_call.1} parent=1 // loop_exit
      _
    %939 = vsyncpa [#allocation3], 1
    %s940 = scalar_lea.sflag [#allocation3], 1
    %941 = vsyncpa %s940, 1
    %942 = vsyncpa [#allocation6], 1
    %943 = vsyncpa [#allocation4], 1
    %s944 = scalar_lea.sflag [#allocation4], 1
    %945 = vsyncpa %s944, 1

</llo_original>
